<compile_context>
chip_gen: v7x
topology: tpu7x:2x2x1
jax: 0.10.0
libtpu: 0.0.40
codegen_flags: <defaults>
</compile_context>

<pallas_src>
import functools

import jax
import jax.numpy as jnp
import numpy as np
from jax import lax
from jax.experimental import pallas as pl
from jax.experimental.pallas import tpu as pltpu

EPS = 1e-5  # nn.InstanceNorm2d default eps (affine=False, no running stats)


def _vmem_cap_bytes():
    """Physical per-core VMEM; conservative 64 MiB (v7x) fallback if unqueryable."""
    try:
        return int(pltpu.get_tpu_info().vmem_capacity_bytes)
    except Exception:
        return 64 << 20


def _pick_tile_rows(h_out, w_out, target_rows):
    """Largest divisor d of h_out with d*w_out <= target_rows; prefer flattened row
    counts that are multiples of 128 (lane-dense channels-major store), then 8."""
    if h_out * w_out <= target_rows:
        return h_out
    best, best8, best128 = 1, None, None
    for d in range(1, h_out + 1):
        if h_out % d or d * w_out > target_rows:
            continue
        m = d * w_out
        best = d
        if m % 8 == 0:
            best8 = d
        if m % 128 == 0:
            best128 = d
    if best128 is not None:
        return best128
    if best8 is not None:
        return best8
    return best


def _conv_in_relu_kernel(x_ref, w_ref, o_ref, sum_ref, ssq_ref, *stash,
                         stride, tile_rows, w_out, kwb, s_total, two_pass,
                         use_stash, c_store):
    # x_ref : (Hq, s, Wq, s*C_in)  padded / phase-split input slab, one batch, resident
    # w_ref : (3*kwb*s*C_in, C_out_pad) flattened tap matrix, resident
    # o_ref : (C8, m) channels-major output tile (spatial on lanes)
    # sum_ref, ssq_ref : (1, C_out_pad) f32 running per-channel stats (two-pass mode)
    # stash : optional (n_tiles, m, C_out_pad) f32 conv stash (two-pass, no recompute)
    s = stride
    phase = pl.program_id(1)
    t = pl.program_id(2)
    sc = x_ref.shape[-1]                       # s * C_in
    m = tile_rows * w_out
    r0 = t * tile_rows
    if tile_rows % 8 == 0:
        r0 = pl.multiple_of(r0, 8)
    inv_n = 1.0 / float(s_total)
    stash_ref = stash[0] if use_stash else None

    def conv():
        # Per-tile VMEM im2col: one (m, 3*kwb*sc) operand -> single MXU dot.
        pieces = []
        for kh in range(3):
            rows = x_ref[pl.ds(r0 + kh // s, tile_rows), kh % s, :, :]
            rows = rows.astype(jnp.float32)    # window slicing / concat in f32 layout
            for wb in range(kwb):
                pieces.append(rows[:, wb:wb + w_out, :].reshape(m, sc))
        a = jnp.concatenate(pieces, axis=-1).astype(w_ref.dtype)
        return jnp.dot(a, w_ref[...], preferred_element_type=jnp.float32)

    def normalize_store(acc, ysum, yssq):
        mean = ysum * inv_n
        var = jnp.maximum(yssq * inv_n - mean * mean, 0.0)
        y = jnp.maximum((acc - mean) * lax.rsqrt(var + EPS), 0.0)
        # channels-major store: NCHW falls out of the wrapper as a pure reshape.
        o_ref[...] = jnp.transpose(y)[:c_store, :].astype(o_ref.dtype)

    if two_pass:
        @pl.when((phase == 0) & (t == 0))
        def _():
            sum_ref[...] = jnp.zeros_like(sum_ref)
            ssq_ref[...] = jnp.zeros_like(ssq_ref)

        @pl.when(phase == 0)
        def _():
            acc = conv()
            sum_ref[...] += jnp.sum(acc, axis=0, keepdims=True)
            ssq_ref[...] += jnp.sum(acc * acc, axis=0, keepdims=True)
            if use_stash:
                stash_ref[t] = acc

        @pl.when(phase == 1)
        def _():
            acc = stash_ref[t] if use_stash else conv()
            normalize_store(acc, sum_ref[...], ssq_ref[...])
    else:
        # Single tile covers the whole image: stats directly from this tile.
        acc = conv()
        normalize_store(acc,
                        jnp.sum(acc, axis=0, keepdims=True),
                        jnp.sum(acc * acc, axis=0, keepdims=True))


@functools.partial(jax.jit,
                   static_argnames=("stride", "tile_rows_target", "compute_dtype"))
def conv_in_relu(x_nchw, weight, bias=None, *, stride=1, tile_rows_target=None,
                 compute_dtype=None):
    """x_nchw: (N, C_in, H, W); weight: (C_out, C_in, 3, 3); bias: (C_out,).
    bias is accepted for interface parity but unused: InstanceNorm2d(affine=False)
    subtracts the per-channel mean, which cancels a per-channel constant exactly."""
    del bias
    n, c_in, h, w = x_nchw.shape
    c_out = weight.shape[0]
    s = int(stride)
    out_dtype = x_nchw.dtype
    cdt = jnp.dtype(compute_dtype) if compute_dtype is not None else x_nchw.dtype

    h_out = (h + 2 - 3) // s + 1
    w_out = (w + 2 - 3) // s + 1
    c_pad = ((c_out + 127) // 128) * 128      # MXU N dim (lane-dense matmul)
    c8 = ((c_out + 7) // 8) * 8               # channels actually stored (sublane-dense)

    cap = _vmem_cap_bytes()
    if tile_rows_target is None:
        tile_rows_target = 512 if cap <= (64 << 20) else 1024

    # ---- input: NCHW -> NHWC, pad by 1, round padded H/W up to a multiple of s, then
    # split H -> (H_block, H_phase) and fold the W phase into the channel dim.  Pure
    # reshapes — no HBM im2col blowup.
    x = jnp.transpose(x_nchw, (0, 2, 3, 1)).astype(cdt)
    h_p, w_p = h + 2, w + 2
    hq, wq = -(-h_p // s), -(-w_p // s)
    x = jnp.pad(x, ((0, 0), (1, 1 + hq * s - h_p), (1, 1 + wq * s - w_p), (0, 0)))
    sc = s * c_in
    x = x.reshape(n, hq, s, wq, sc)

    # ---- weights: (C_out, C_in, 3, 3) -> single (3*kwb*sc, C_out_pad) tap matrix whose
    # K ordering matches the in-kernel im2col concat (kh outer, wb, then (w_phase, ci)).
    kwb = (3 - 1) // s + 1
    k_total = 3 * kwb * sc
    w_hwio = jnp.transpose(weight, (2, 3, 1, 0)).astype(cdt)          # (3,3,C_in,C_out)
    w_cat = jnp.pad(w_hwio, ((0, 0), (0, kwb * s - 3), (0, 0), (0, c_pad - c_out)))
    w_cat = w_cat.reshape(k_total, c_pad)

    # ---- spatial tiling + InstanceNorm pass structure
    tr = _pick_tile_rows(h_out, w_out, tile_rows_target)
    n_tiles = h_out // tr
    m = tr * w_out
    two_pass = n_tiles > 1
    n_phase = 2 if two_pass else 1
    # Flat (N, C8, H*W) output needs lane-aligned tile columns when tiled.
    flat_out = (not two_pass) or (m % 128 == 0)

    stash_bytes = n_tiles * m * c_pad * 4
    use_stash = two_pass and stash_bytes <= cap // 4

    # ---- VMEM budget from the actual resident blocks; clamp to the chip's capacity.
    it = jnp.dtype(cdt).itemsize
    slab_b = hq * s * wq * sc * it
    w_b = k_total * c_pad * it
    out_b = c8 * m * jnp.dtype(out_dtype).itemsize
    tmp_b = 2 * m * k_total * 4 + 3 * m * c_pad * 4          # im2col copy + acc/temps
    need = (2 * slab_b + 2 * w_b + 2 * out_b + tmp_b + (4 << 20)
            + (stash_bytes if use_stash else 0))
    vmem_limit = int(min(max(need, 32 << 20), int(0.9 * cap)))

    kernel = functools.partial(
        _conv_in_relu_kernel, stride=s, tile_rows=tr, w_out=w_out, kwb=kwb,
        s_total=h_out * w_out, two_pass=two_pass, use_stash=use_stash, c_store=c8)

    if flat_out:
        out_shape = jax.ShapeDtypeStruct((n, c8, n_tiles * m), out_dtype)
        out_spec = pl.BlockSpec((pl.Squeezed(), c8, m), lambda b, p, t: (b, 0, t * p))
    else:
        out_shape = jax.ShapeDtypeStruct((n, n_tiles, c8, m), out_dtype)
        out_spec = pl.BlockSpec((pl.Squeezed(), pl.Squeezed(), c8, m),
                                lambda b, p, t: (b, t * p, 0, 0))

    scratch = [pltpu.VMEM((1, c_pad), jnp.float32),    # sum(y)   per channel
               pltpu.VMEM((1, c_pad), jnp.float32)]    # sum(y*y) per channel
    if use_stash:
        scratch.append(pltpu.VMEM((n_tiles, m, c_pad), jnp.float32))

    out = pl.pallas_call(
        kernel,
        out_shape=out_shape,
        grid_spec=pltpu.PrefetchScalarGridSpec(
            num_scalar_prefetch=0,
            grid=(n, n_phase, n_tiles),
            in_specs=[
                # Per-batch padded slab: DMA'd once per batch element, stays resident
                # across phases and spatial tiles (index_map only depends on b).
                pl.BlockSpec((pl.Squeezed(), hq, s, wq, sc),
                             lambda b, p, t: (b, 0, 0, 0, 0)),
                # Flattened tap matrix: resident for the whole call.
                pl.BlockSpec((k_total, c_pad), lambda b, p, t: (0, 0)),
            ],
            # Phase 0 (stats) parks on tile 0 and never writes; phase 1 writes tile t.
            out_specs=out_spec,
            scratch_shapes=scratch),
        compiler_params=pltpu.CompilerParams(
            dimension_semantics=("parallel", "arbitrary", "arbitrary"),
            vmem_limit_bytes=vmem_limit),
    )(x, w_cat)

    # ---- wrapper epilogue: pure reshape (flat) or a cheap unpadded tile transpose.
    if flat_out:
        y = out.reshape(n, c8, h_out, w_out)
    else:
        y = out.reshape(n, n_tiles, c8, tr, w_out).transpose(0, 2, 1, 3, 4)
        y = y.reshape(n, c8, h_out, w_out)
    return y[:, :c_out] if c8 != c_out else y


def _reference(x_nchw, weight, bias, stride):
    """Pure-JAX reference: conv(+bias) + InstanceNorm + ReLU (high-precision conv)."""
    y = lax.conv_general_dilated(
        x_nchw, weight, window_strides=(stride, stride), padding=((1, 1), (1, 1)),
        dimension_numbers=("NCHW", "OIHW", "NCHW"), precision=lax.Precision.HIGHEST)
    y = y + bias.reshape(1, -1, 1, 1)
    mean = jnp.mean(y, axis=(2, 3), keepdims=True)
    var = jnp.mean((y - mean) ** 2, axis=(2, 3), keepdims=True)
    y = (y - mean) / jnp.sqrt(var + EPS)
    return jnp.maximum(y, 0.0)


if __name__ == "__main__":
    key = jax.random.PRNGKey(0)
    k1, k2, k3, k4, k5, k6 = jax.random.split(key, 6)
    bound = 1.0 / np.sqrt(4 * 9)

    # Config 1: ConvINRelu(4, 8, stride=2) on (2, 4, 16, 16) -> single-tile path.
    x1 = jax.random.normal(k1, (2, 4, 16, 16), dtype=jnp.float32)
    w1 = jax.random.uniform(k2, (8, 4, 3, 3), jnp.float32, -bound, bound)
    b1 = jax.random.uniform(k3, (8,), jnp.float32, -bound, bound)
    out1 = jax.block_until_ready(conv_in_relu(x1, w1, b1, stride=2))
    ref1 = _reference(x1, w1, b1, 2)
    np.testing.assert_allclose(np.asarray(out1), np.asarray(ref1), rtol=5e-4, atol=5e-4)

    # Config 2: stride 1, tiny tile target -> two-pass stats + VMEM conv stash
    # (tiled, non-128-aligned tiles -> per-tile output layout).
    x2 = jax.random.normal(k4, (2, 4, 16, 16), dtype=jnp.float32)
    w2 = jax.random.uniform(k5, (8, 4, 3, 3), jnp.float32, -bound, bound)
    b2 = jax.random.uniform(k6, (8,), jnp.float32, -bound, bound)
    out2 = jax.block_until_ready(conv_in_relu(x2, w2, b2, stride=1, tile_rows_target=64))
    ref2 = _reference(x2, w2, b2, 1)
    np.testing.assert_allclose(np.asarray(out2), np.asarray(ref2), rtol=5e-4, atol=5e-4)

    # Config 3: stride 1 on 32x32 -> two-pass with 128-aligned tiles (flat NCHW output).
    x3 = jax.random.normal(k1, (2, 4, 32, 32), dtype=jnp.float32)
    out3 = jax.block_until_ready(conv_in_relu(x3, w1, b1, stride=1, tile_rows_target=512))
    ref3 = _reference(x3, w1, b1, 1)
    np.testing.assert_allclose(np.asarray(out3), np.asarray(ref3), rtol=5e-4, atol=5e-4)

    # Config 4: bfloat16 compute path (bf16 slab/weights, f32 stats) -> loose tolerance.
    out4 = jax.block_until_ready(
        conv_in_relu(x1, w1, b1, stride=2, compute_dtype=jnp.bfloat16))
    np.testing.assert_allclose(np.asarray(out4), np.asarray(ref1), rtol=8e-2, atol=8e-2)

    print("KERNEL_OK")
</pallas_src>

<mosaic_0001>
module attributes {stable_mosaic.version = 11 : i64} {
  func.func @_conv_in_relu_kernel(%arg0: i32, %arg1: i32, %arg2: i32, %arg3: memref<1x9x2x9x8xf32, #tpu.memory_space<vmem>>, %arg4: memref<48x128xf32, #tpu.memory_space<vmem>>, %arg5: memref<1x8x64xf32, #tpu.memory_space<vmem>>, %arg6: memref<1x128xf32, #tpu.memory_space<vmem>>, %arg7: memref<1x128xf32, #tpu.memory_space<vmem>>) attributes {dimension_semantics = [#tpu.dimension_semantics<parallel>, #tpu.dimension_semantics<arbitrary>, #tpu.dimension_semantics<arbitrary>], iteration_bounds = array<i64: 2, 1, 1>, scalar_prefetch = 0 : i64, scratch_operands = 2 : i64, tpu.core_type = #tpu.core_type<tc>, window_params = [{transform_indices = @transform_0, window_bounds = array<i64: 1, 9, 2, 9, 8>}, {pipeline_mode = #tpu.pipeline_mode<synchronous>, transform_indices = @transform_1, window_bounds = array<i64: 48, 128>}, {transform_indices = @transform_2, window_bounds = array<i64: 1, 8, 64>}]} {
    %c8_i32 = arith.constant 8 : i32
    %0 = arith.muli %arg2, %c8_i32 : i32
    %1 = tpu.assume_multiple %0, 8 : i32
    %c0_i32 = arith.constant 0 : i32
    %2 = arith.addi %1, %c0_i32 : i32
    %c0 = arith.constant 0 : index
    %3 = arith.index_cast %2 : i32 to index
    %c0_0 = arith.constant 0 : index
    %c0_1 = arith.constant 0 : index
    %c0_2 = arith.constant 0 : index
    %4 = vector.load %arg3[%c0, %3, %c0_0, %c0_1, %c0_2] : memref<1x9x2x9x8xf32, #tpu.memory_space<vmem>>, vector<1x8x1x9x8xf32>
    %5 = vector.shape_cast %4 : vector<1x8x1x9x8xf32> to vector<8x9x8xf32>
    %6 = vector.extract_strided_slice %5 {offsets = [0, 0, 0], sizes = [8, 8, 8], strides = [1, 1, 1]} : vector<8x9x8xf32> to vector<8x8x8xf32>
    %7 = vector.shape_cast %6 : vector<8x8x8xf32> to vector<64x8xf32>
    %8 = vector.extract_strided_slice %5 {offsets = [0, 1, 0], sizes = [8, 8, 8], strides = [1, 1, 1]} : vector<8x9x8xf32> to vector<8x8x8xf32>
    %9 = vector.shape_cast %8 : vector<8x8x8xf32> to vector<64x8xf32>
    %c0_i32_3 = arith.constant 0 : i32
    %10 = arith.addi %1, %c0_i32_3 : i32
    %c0_4 = arith.constant 0 : index
    %11 = arith.index_cast %10 : i32 to index
    %c1 = arith.constant 1 : index
    %c0_5 = arith.constant 0 : index
    %c0_6 = arith.constant 0 : index
    %12 = vector.load %arg3[%c0_4, %11, %c1, %c0_5, %c0_6] : memref<1x9x2x9x8xf32, #tpu.memory_space<vmem>>, vector<1x8x1x9x8xf32>
    %13 = vector.shape_cast %12 : vector<1x8x1x9x8xf32> to vector<8x9x8xf32>
    %14 = vector.extract_strided_slice %13 {offsets = [0, 0, 0], sizes = [8, 8, 8], strides = [1, 1, 1]} : vector<8x9x8xf32> to vector<8x8x8xf32>
    %15 = vector.shape_cast %14 : vector<8x8x8xf32> to vector<64x8xf32>
    %16 = vector.extract_strided_slice %13 {offsets = [0, 1, 0], sizes = [8, 8, 8], strides = [1, 1, 1]} : vector<8x9x8xf32> to vector<8x8x8xf32>
    %17 = vector.shape_cast %16 : vector<8x8x8xf32> to vector<64x8xf32>
    %c1_i32 = arith.constant 1 : i32
    %18 = arith.addi %1, %c1_i32 : i32
    %c0_7 = arith.constant 0 : index
    %19 = arith.index_cast %18 : i32 to index
    %c0_8 = arith.constant 0 : index
    %c0_9 = arith.constant 0 : index
    %c0_10 = arith.constant 0 : index
    %20 = vector.load %arg3[%c0_7, %19, %c0_8, %c0_9, %c0_10] : memref<1x9x2x9x8xf32, #tpu.memory_space<vmem>>, vector<1x8x1x9x8xf32>
    %21 = vector.shape_cast %20 : vector<1x8x1x9x8xf32> to vector<8x9x8xf32>
    %22 = vector.extract_strided_slice %21 {offsets = [0, 0, 0], sizes = [8, 8, 8], strides = [1, 1, 1]} : vector<8x9x8xf32> to vector<8x8x8xf32>
    %23 = vector.shape_cast %22 : vector<8x8x8xf32> to vector<64x8xf32>
    %24 = vector.extract_strided_slice %21 {offsets = [0, 1, 0], sizes = [8, 8, 8], strides = [1, 1, 1]} : vector<8x9x8xf32> to vector<8x8x8xf32>
    %25 = vector.shape_cast %24 : vector<8x8x8xf32> to vector<64x8xf32>
    %26 = tpu.concatenate %7, %9, %15, %17, %23, %25 in 1 : vector<64x8xf32>, vector<64x8xf32>, vector<64x8xf32>, vector<64x8xf32>, vector<64x8xf32>, vector<64x8xf32> -> vector<64x48xf32>
    %c0_11 = arith.constant 0 : index
    %c0_12 = arith.constant 0 : index
    %27 = vector.load %arg4[%c0_11, %c0_12] : memref<48x128xf32, #tpu.memory_space<vmem>>, vector<48x128xf32>
    %cst = arith.constant dense<0.000000e+00> : vector<64x128xf32>
    %28 = tpu.matmul %26, %27, %cst {dimension_numbers = #tpu.dot_dimension_numbers<[1], [0], [0], [1], [0, 0, 1, 1], [], []>} : vector<64x48xf32>, vector<48x128xf32>, vector<64x128xf32> -> vector<64x128xf32>
    %cst_13 = arith.constant dense<0.000000e+00> : vector<128xf32>
    %29 = vector.multi_reduction <add>, %28, %cst_13 [0] : vector<64x128xf32> to vector<128xf32>
    %30 = vector.shape_cast %29 : vector<128xf32> to vector<1x128xf32>
    %31 = arith.mulf %28, %28 : vector<64x128xf32>
    %cst_14 = arith.constant dense<0.000000e+00> : vector<128xf32>
    %32 = vector.multi_reduction <add>, %31, %cst_14 [0] : vector<64x128xf32> to vector<128xf32>
    %33 = vector.shape_cast %32 : vector<128xf32> to vector<1x128xf32>
    %cst_15 = arith.constant 1.562500e-02 : f32
    %34 = vector.broadcast %cst_15 : f32 to vector<1x128xf32>
    %35 = arith.mulf %30, %34 : vector<1x128xf32>
    %cst_16 = arith.constant 1.562500e-02 : f32
    %36 = vector.broadcast %cst_16 : f32 to vector<1x128xf32>
    %37 = arith.mulf %33, %36 : vector<1x128xf32>
    %38 = arith.mulf %35, %35 : vector<1x128xf32>
    %39 = arith.subf %37, %38 : vector<1x128xf32>
    %cst_17 = arith.constant 0.000000e+00 : f32
    %40 = vector.broadcast %cst_17 : f32 to vector<1x128xf32>
    %41 = arith.maximumf %39, %40 : vector<1x128xf32>
    %42 = vector.broadcast %35 : vector<1x128xf32> to vector<64x128xf32>
    %43 = arith.subf %28, %42 : vector<64x128xf32>
    %cst_18 = arith.constant 9.99999974E-6 : f32
    %44 = vector.broadcast %cst_18 : f32 to vector<1x128xf32>
    %45 = arith.addf %41, %44 : vector<1x128xf32>
    %46 = math.rsqrt %45 : vector<1x128xf32>
    %47 = vector.broadcast %46 : vector<1x128xf32> to vector<64x128xf32>
    %48 = arith.mulf %43, %47 : vector<64x128xf32>
    %cst_19 = arith.constant 0.000000e+00 : f32
    %49 = vector.broadcast %cst_19 : f32 to vector<64x128xf32>
    %50 = arith.maximumf %48, %49 : vector<64x128xf32>
    %51 = tpu.transpose %50, [1, 0] : vector<64x128xf32> -> vector<128x64xf32>
    %52 = vector.extract_strided_slice %51 {offsets = [0, 0], sizes = [8, 64], strides = [1, 1]} : vector<128x64xf32> to vector<8x64xf32>
    %c0_20 = arith.constant 0 : index
    %c0_21 = arith.constant 0 : index
    %c0_22 = arith.constant 0 : index
    %53 = vector.load %arg5[%c0_20, %c0_21, %c0_22] : memref<1x8x64xf32, #tpu.memory_space<vmem>>, vector<1x8x64xf32>
    %54 = vector.shape_cast %53 : vector<1x8x64xf32> to vector<8x64xf32>
    %55 = vector.shape_cast %52 : vector<8x64xf32> to vector<1x8x64xf32>
    tpu.vector_store %arg5[%c0_20, %c0_21, %c0_22], %55 {strides = array<i32>} : memref<1x8x64xf32, #tpu.memory_space<vmem>>, vector<1x8x64xf32>,
    return
  }
  func.func @transform_0(%arg0: i32, %arg1: i32, %arg2: i32) -> (i32, i32, i32, i32, i32) {
    %c0_i32 = arith.constant 0 : i32
    %c0_i32_0 = arith.constant 0 : i32
    %c0_i32_1 = arith.constant 0 : i32
    %c0_i32_2 = arith.constant 0 : i32
    %c0_i32_3 = arith.constant 0 : i32
    return %arg0, %c0_i32, %c0_i32_0, %c0_i32_1, %c0_i32_2 : i32, i32, i32, i32, i32
  }
  func.func @transform_1(%arg0: i32, %arg1: i32, %arg2: i32) -> (i32, i32) {
    %c0_i32 = arith.constant 0 : i32
    %c0_i32_0 = arith.constant 0 : i32
    %c0_i32_1 = arith.constant 0 : i32
    return %c0_i32, %c0_i32_0 : i32, i32
  }
  func.func @transform_2(%arg0: i32, %arg1: i32, %arg2: i32) -> (i32, i32, i32) {
    %0 = arith.muli %arg2, %arg1 : i32
    %c0_i32 = arith.constant 0 : i32
    %c0_i32_0 = arith.constant 0 : i32
    return %arg0, %c0_i32, %0 : i32, i32, i32
  }
}

</mosaic_0001>

<llo_original>
// kernel: conv_in_relu.1
$region0: #{conv_in_relu.1}
  #allocation0 [shape = 'u32[]', space=smem, size = 0x4, offset = 0x4, fixed_abs, tag = 'smem constant byte address 0x4 - core index']
  #allocation1 [shape = 'u32[144,128]{1,0:T(1,128)}', space=vmem, size = 0x12000, scoped, tag = 'internal scratch']
  #allocation2 [shape = 'f32[1,128]{1,0:T(1,128)}', space=vmem, size = 0x200, scoped, tag = 'scratch operand']
  #allocation3 [shape = 'f32[1,128]{1,0:T(1,128)}', space=vmem, size = 0x200, scoped, tag = 'scratch operand']
  %s0 = inlined_call_operand.vmem [shape: f32[2,9,2,9,8], index: 0, kind: input, shape index: {}]
  %s1 = inlined_call_operand.vmem [shape: f32[48,128], index: 1, kind: input, shape index: {}]
  %s2 = inlined_call_operand.vmem [shape: f32[2,8,64], index: 2, kind: output, shape index: {}]
  %s3 = sld [smem:[#allocation0]]
  $region41: #{conv_in_relu.1} parent=0
    _
  %s5 = ssub.s32 1, %s3
  %s6 = scalar_select 0, %s5, %s3
  loop: start=0, step=1, limit=4
  $region2: #{conv_in_relu.1} parent=0 // loop_pre_header
    _
  $region3: #{conv_in_relu.1} parent=0 // loop_header
    %s8 = sphi 0, %s12
    %p9 = scmp.ge.s32.totalorder %s8, 4
    %s15 = sphi 0, %s34
    %s16 = sphi 0, %s30
    %s17 = sphi 0, %s26
    %s18 = sphi 0, %s15
    %s19 = sphi 0, %s16
    %s20 = sphi 0, %s17
    %s21 = sphi 0, %s18
    %s22 = sphi 0, %s19
    %s23 = sphi 0, %s20
    %s37 = sphi 0, %s39
    %s40 = sphi 0, %s37
    %s41 = sphi 0, %s40
    %s57 = sphi 0, %s41
    %s61 = sphi 0, %s61
    %s63 = sphi 0, %s61
    %s64 = sphi 0, %s63
    %s78 = sphi 0, %s64
    %s88 = sphi 0, %s90
    %s91 = sphi 0, %s88
    %s92 = sphi 0, %s91
    %s108 = sphi 0, %s92
  $region4: #{conv_in_relu.1} parent=0 // loop_header_branch
    %11 = sbr.rel (%p9) target = $region8
  $region5: #{conv_in_relu.1} parent=0 // loop_body
    %s13 = ssub.s32 %s8, 1
    %s14 = ssub.s32 %s8, 2
    %s24 = sadd.s32 1, %s17
    %p25 = scmp.ge.s32.totalorder %s24, 1
    %s26 = scalar_select %p25, 0, %s24
    %s27 = sadd.s32 1, %s16
    %s28 = scalar_select %p25, %s27, %s16
    %p29 = scmp.ge.s32.totalorder %s28, 1
    %s30 = scalar_select %p29, 0, %s28
    %s31 = sadd.s32 1, %s15
    %s32 = scalar_select %p29, %s31, %s15
    %p33 = scmp.ge.s32.totalorder %s32, 2
    %s34 = scalar_select %p33, 0, %s32
    %s35 = ssub.s32 %s15, %s34
    %p36 = scmp.eq.s32.totalorder %s35, 0
    %s38 = sadd.s32 %s37, 1
    %s39 = scalar_select %p36, %s37, %s38
    %p42 = pneg %p36
    %p43 = scmp.eq.s32.totalorder %s8, 1
    %p44 = por %p42, %p43
    %p45 = scmp.ne.s32.totalorder %s37, %s40
    %p46 = scmp.eq.s32.totalorder %s8, 0
    %p47 = por %p45, %p46
    %p48 = scmp.ne.s32.totalorder %s37, %s40
    %p49 = scmp.eq.s32.totalorder %s13, 1
    %p50 = por %p48, %p49
    %p51 = scmp.ne.s32.totalorder %s40, %s41
    %p52 = scmp.eq.s32.totalorder %s13, 0
    %p53 = por %p51, %p52
    %p54 = scmp.ne.s32.totalorder %s40, %s41
    %p55 = scmp.eq.s32.totalorder %s14, 1
    %p56 = por %p54, %p55
    %p58 = scmp.ne.s32.totalorder %s41, %s57
    %p59 = scmp.eq.s32.totalorder %s14, 0
    %p60 = por %p58, %p59
    %s62 = sadd.s32 %s61, 1
    %p65 = scmp.eq.s32.totalorder %s8, 1
    %p66 = scmp.ne.s32.totalorder %s61, %s63
    %p67 = scmp.eq.s32.totalorder %s8, 0
    %p68 = por %p66, %p67
    %p69 = scmp.ne.s32.totalorder %s61, %s63
    %p70 = scmp.eq.s32.totalorder %s13, 1
    %p71 = por %p69, %p70
    %p72 = scmp.ne.s32.totalorder %s63, %s64
    %p73 = scmp.eq.s32.totalorder %s13, 0
    %p74 = por %p72, %p73
    %p75 = scmp.ne.s32.totalorder %s63, %s64
    %p76 = scmp.eq.s32.totalorder %s14, 1
    %p77 = por %p75, %p76
    %p79 = scmp.ne.s32.totalorder %s64, %s78
    %p80 = scmp.eq.s32.totalorder %s14, 0
    %p81 = por %p79, %p80
    %s82 = smul.u32 %s17, %s16
    %s83 = smul.u32 %s26, %s30
    %s84 = ssub.s32 %s15, %s34
    %s85 = ssub.s32 %s82, %s83
    %s86 = sor.u32 %s84, %s85
    %p87 = scmp.eq.s32.totalorder %s86, 0
    %s89 = sadd.s32 %s88, 1
    %s90 = scalar_select %p87, %s88, %s89
    %p93 = pneg %p87
    %p94 = scmp.eq.s32.totalorder %s8, 1
    %p95 = por %p93, %p94
    %p96 = scmp.ne.s32.totalorder %s88, %s91
    %p97 = scmp.eq.s32.totalorder %s8, 0
    %p98 = por %p96, %p97
    %p99 = scmp.ne.s32.totalorder %s88, %s91
    %p100 = scmp.eq.s32.totalorder %s13, 1
    %p101 = por %p99, %p100
    %p102 = scmp.ne.s32.totalorder %s91, %s92
    %p103 = scmp.eq.s32.totalorder %s13, 0
    %p104 = por %p102, %p103
    %p105 = scmp.ne.s32.totalorder %s91, %s92
    %p106 = scmp.eq.s32.totalorder %s14, 1
    %p107 = por %p105, %p106
    %p109 = scmp.ne.s32.totalorder %s92, %s108
    %p110 = scmp.eq.s32.totalorder %s14, 0
    %p111 = por %p109, %p110
    %p112 = scmp.le.s32.totalorder 1, %s8
    %p113 = scmp.lt.s32.totalorder %s8, 3
    %p114 = pnand %p112, %p113
    %p115 = pneg %p114
    // Predicated region
    $region9: #{conv_in_relu.1} parent=5 // pred_check
      _
    $region10: #{conv_in_relu.1} parent=5 // pred_check_branch
      %117 = sbr.rel (%p114) target = $region12
    $region11: #{conv_in_relu.1} parent=5 // pred_region
      %s118 = ssub.s32 %s8, 1
      // Predicated region
      $region13: #{conv_in_relu.1} parent=11 // pred_check
        %p119 = pneg %p74
      $region14: #{conv_in_relu.1} parent=11 // pred_check_branch
        %121 = sbr.rel (%p119) target = $region16
      $region15: #{conv_in_relu.1} parent=11 // pred_region
        _
      $region16: #{conv_in_relu.1} parent=11 // pred_fallthru
        _
    $region12: #{conv_in_relu.1} parent=5 // pred_fallthru
      _
    %p122 = scmp.lt.s32.totalorder %s8, 2
    // Predicated region
    $region17: #{conv_in_relu.1} parent=5 // pred_check
      %p123 = pneg %p122
    $region18: #{conv_in_relu.1} parent=5 // pred_check_branch
      %125 = sbr.rel (%p123) target = $region20
    $region19: #{conv_in_relu.1} parent=5 // pred_region
      // Predicated region
      $region21: #{conv_in_relu.1} parent=19 // pred_check
        %p126 = pneg %p47
      $region22: #{conv_in_relu.1} parent=19 // pred_check_branch
        %128 = sbr.rel (%p126) target = $region24
      $region23: #{conv_in_relu.1} parent=19 // pred_region
        %p129 = scmp.lt.s32.totalorder %s15, 1
        %s130 = scalar_select %p129, %s15, 1
        %s131 = smul.addr %s130, 36
        %s132 = smul.addr %s131, 8
        %s133 = scalar_lea.vmem %s0, %s132
      $region24: #{conv_in_relu.1} parent=19 // pred_fallthru
        _
    $region20: #{conv_in_relu.1} parent=5 // pred_fallthru
      _
    %p134 = scmp.le.s32.totalorder 1, %s8
    %p135 = scmp.lt.s32.totalorder %s8, 3
    %p136 = pnand %p134, %p135
    %p137 = pneg %p136
    // Predicated region
    $region25: #{conv_in_relu.1} parent=5 // pred_check
      _
    $region26: #{conv_in_relu.1} parent=5 // pred_check_branch
      %139 = sbr.rel (%p136) target = $region28
    $region27: #{conv_in_relu.1} parent=5 // pred_region
      %s140 = ssub.s32 %s8, 1
      %p141 = scmp.lt.s32.totalorder %s18, 1
      %s142 = scalar_select %p141, %s18, 1
      %s143 = smul.addr %s142, 36
      %s144 = smul.addr %s143, 8
      %s145 = scalar_lea.vmem %s0, %s144
      %p146 = pneg %p53
      %p147 = pneg %p50
      %p148 = pneg %p74
      %p149 = pneg %p71
      %p150 = pneg %p104
      %p151 = pneg %p101
      %s152 = smul.u32 %s20, %s19
      %p153 = scmp.lt.s32.totalorder %s18, 1
      %s154 = scalar_select %p153, %s18, 1
      %p155 = scmp.lt.s32.totalorder %s152, 0
      %s156 = scalar_select %p155, %s152, 0
      %s157 = sadd.s32 %s156, %s154
      %s158 = smul.addr %s157, 8
      %s159 = scalar_lea.vmem %s2, %s158
      %p160 = scmp.lt.s32.totalorder %s18, 1
      %s161 = scalar_select %p160, %s18, 1
      %s162 = smul.addr %s161, 36
      %s163 = smul.addr %s162, 8
      %s164 = scalar_lea.vmem %s0, %s163
      %s165 = smul.u32 %s20, %s19
      %p166 = scmp.lt.s32.totalorder %s18, 1
      %s167 = scalar_select %p166, %s18, 1
      %p168 = scmp.lt.s32.totalorder %s165, 0
      %s169 = scalar_select %p168, %s165, 0
      %s170 = sadd.s32 %s169, %s167
      %s171 = smul.addr %s170, 8
      %s172 = scalar_lea.vmem %s2, %s171
      %s173 = smul.u32 %s20, %s19
      %s174 = smul.u32 %s20, 8
      %s175 = smul.u32 %s174, 32
      %s176 = scalar_lea.vmem %s164, %s175
      %v177 = vld [vmem:[%s176] sm:$0xff]
      %v178 = vld [vmem:[%s176 + $0x8] sm:$0x1]
      %v179 = vld [vmem:[%s176 + $0x20] sm:$0xff]
      %v180 = vld [vmem:[%s176 + $0x28] sm:$0x1]
      %v181 = vld [vmem:[%s176 + $0x40] sm:$0xff]
      %v182 = vld [vmem:[%s176 + $0x48] sm:$0x1]
      %v183 = vld [vmem:[%s176 + $0x60] sm:$0xff]
      %v184 = vld [vmem:[%s176 + $0x68] sm:$0x1]
      %v185 = vld [vmem:[%s176 + $0x80] sm:$0xff]
      %v186 = vld [vmem:[%s176 + $0x88] sm:$0x1]
      %v187 = vld [vmem:[%s176 + $0xa0] sm:$0xff]
      %v188 = vld [vmem:[%s176 + $0xa8] sm:$0x1]
      %v189 = vld [vmem:[%s176 + $0xc0] sm:$0xff]
      %v190 = vld [vmem:[%s176 + $0xc8] sm:$0x1]
      %v191 = vld [vmem:[%s176 + $0xe0] sm:$0xff]
      %v192 = vld [vmem:[%s176 + $0xe8] sm:$0x1]
      %vm209 = vcmask 1046528
      %v210 = vrot.slane %v177, 1
      %v211 = vrot.slane %v178, 1
      %v212 = vsel %vm209, %v210, %v211
      %v213 = vrot.slane %v179, 1
      %v214 = vrot.slane %v180, 1
      %v215 = vsel %vm209, %v213, %v214
      %v216 = vrot.slane %v181, 1
      %v217 = vrot.slane %v182, 1
      %v218 = vsel %vm209, %v216, %v217
      %v219 = vrot.slane %v183, 1
      %v220 = vrot.slane %v184, 1
      %v221 = vsel %vm209, %v219, %v220
      %v222 = vrot.slane %v185, 1
      %v223 = vrot.slane %v186, 1
      %v224 = vsel %vm209, %v222, %v223
      %v225 = vrot.slane %v187, 1
      %v226 = vrot.slane %v188, 1
      %v227 = vsel %vm209, %v225, %v226
      %v228 = vrot.slane %v189, 1
      %v229 = vrot.slane %v190, 1
      %v230 = vsel %vm209, %v228, %v229
      %v231 = vrot.slane %v191, 1
      %v232 = vrot.slane %v192, 1
      %v233 = vsel %vm209, %v231, %v232
      %s234 = sadd.s32 16, %s175
      %s235 = scalar_lea.vmem %s164, %s234
      %v236 = vld [vmem:[%s235] sm:$0xff]
      %v237 = vld [vmem:[%s235 + $0x8] sm:$0x1]
      %v238 = vld [vmem:[%s235 + $0x20] sm:$0xff]
      %v239 = vld [vmem:[%s235 + $0x28] sm:$0x1]
      %v240 = vld [vmem:[%s235 + $0x40] sm:$0xff]
      %v241 = vld [vmem:[%s235 + $0x48] sm:$0x1]
      %v242 = vld [vmem:[%s235 + $0x60] sm:$0xff]
      %v243 = vld [vmem:[%s235 + $0x68] sm:$0x1]
      %v244 = vld [vmem:[%s235 + $0x80] sm:$0xff]
      %v245 = vld [vmem:[%s235 + $0x88] sm:$0x1]
      %v246 = vld [vmem:[%s235 + $0xa0] sm:$0xff]
      %v247 = vld [vmem:[%s235 + $0xa8] sm:$0x1]
      %v248 = vld [vmem:[%s235 + $0xc0] sm:$0xff]
      %v249 = vld [vmem:[%s235 + $0xc8] sm:$0x1]
      %v250 = vld [vmem:[%s235 + $0xe0] sm:$0xff]
      %v251 = vld [vmem:[%s235 + $0xe8] sm:$0x1]
      %v268 = vrot.slane %v236, 1
      %v269 = vrot.slane %v237, 1
      %v270 = vsel %vm209, %v268, %v269
      %v271 = vrot.slane %v238, 1
      %v272 = vrot.slane %v239, 1
      %v273 = vsel %vm209, %v271, %v272
      %v274 = vrot.slane %v240, 1
      %v275 = vrot.slane %v241, 1
      %v276 = vsel %vm209, %v274, %v275
      %v277 = vrot.slane %v242, 1
      %v278 = vrot.slane %v243, 1
      %v279 = vsel %vm209, %v277, %v278
      %v280 = vrot.slane %v244, 1
      %v281 = vrot.slane %v245, 1
      %v282 = vsel %vm209, %v280, %v281
      %v283 = vrot.slane %v246, 1
      %v284 = vrot.slane %v247, 1
      %v285 = vsel %vm209, %v283, %v284
      %v286 = vrot.slane %v248, 1
      %v287 = vrot.slane %v249, 1
      %v288 = vsel %vm209, %v286, %v287
      %v289 = vrot.slane %v250, 1
      %v290 = vrot.slane %v251, 1
      %v291 = vsel %vm209, %v289, %v290
      %s292 = sadd.s32 %s174, 1
      %s293 = smul.u32 %s292, 32
      %s294 = scalar_lea.vmem %s164, %s293
      %v295 = vld [vmem:[%s294] sm:$0xff]
      %v296 = vld [vmem:[%s294 + $0x8] sm:$0x1]
      %v297 = vld [vmem:[%s294 + $0x20] sm:$0xff]
      %v298 = vld [vmem:[%s294 + $0x28] sm:$0x1]
      %v299 = vld [vmem:[%s294 + $0x40] sm:$0xff]
      %v300 = vld [vmem:[%s294 + $0x48] sm:$0x1]
      %v301 = vld [vmem:[%s294 + $0x60] sm:$0xff]
      %v302 = vld [vmem:[%s294 + $0x68] sm:$0x1]
      %v303 = vld [vmem:[%s294 + $0x80] sm:$0xff]
      %v304 = vld [vmem:[%s294 + $0x88] sm:$0x1]
      %v305 = vld [vmem:[%s294 + $0xa0] sm:$0xff]
      %v306 = vld [vmem:[%s294 + $0xa8] sm:$0x1]
      %v307 = vld [vmem:[%s294 + $0xc0] sm:$0xff]
      %v308 = vld [vmem:[%s294 + $0xc8] sm:$0x1]
      %v309 = vld [vmem:[%s294 + $0xe0] sm:$0xff]
      %v310 = vld [vmem:[%s294 + $0xe8] sm:$0x1]
      %v327 = vrot.slane %v295, 1
      %v328 = vrot.slane %v296, 1
      %v329 = vsel %vm209, %v327, %v328
      %v330 = vrot.slane %v297, 1
      %v331 = vrot.slane %v298, 1
      %v332 = vsel %vm209, %v330, %v331
      %v333 = vrot.slane %v299, 1
      %v334 = vrot.slane %v300, 1
      %v335 = vsel %vm209, %v333, %v334
      %v336 = vrot.slane %v301, 1
      %v337 = vrot.slane %v302, 1
      %v338 = vsel %vm209, %v336, %v337
      %v339 = vrot.slane %v303, 1
      %v340 = vrot.slane %v304, 1
      %v341 = vsel %vm209, %v339, %v340
      %v342 = vrot.slane %v305, 1
      %v343 = vrot.slane %v306, 1
      %v344 = vsel %vm209, %v342, %v343
      %v345 = vrot.slane %v307, 1
      %v346 = vrot.slane %v308, 1
      %v347 = vsel %vm209, %v345, %v346
      %v348 = vrot.slane %v309, 1
      %v349 = vrot.slane %v310, 1
      %v350 = vsel %vm209, %v348, %v349
      %351 = vrot.lane.b32.xlu0 %v212, 8
      %v352 = vpop.permute.xlu0 %351
      %353 = vrot.lane.b32.xlu0 %v215, 8
      %v354 = vpop.permute.xlu0 %353
      %355 = vrot.lane.b32.xlu0 %v218, 8
      %v356 = vpop.permute.xlu0 %355
      %357 = vrot.lane.b32.xlu0 %v221, 8
      %v358 = vpop.permute.xlu0 %357
      %359 = vrot.lane.b32.xlu0 %v224, 8
      %v360 = vpop.permute.xlu0 %359
      %361 = vrot.lane.b32.xlu0 %v227, 8
      %v362 = vpop.permute.xlu0 %361
      %363 = vrot.lane.b32.xlu0 %v230, 8
      %v364 = vpop.permute.xlu0 %363
      %365 = vrot.lane.b32.xlu0 %v233, 8
      %v366 = vpop.permute.xlu0 %365
      %375 = vrot.lane.b32.xlu0 %v236, 16
      %v376 = vpop.permute.xlu0 %375
      %377 = vrot.lane.b32.xlu0 %v238, 16
      %v378 = vpop.permute.xlu0 %377
      %379 = vrot.lane.b32.xlu0 %v240, 16
      %v380 = vpop.permute.xlu0 %379
      %381 = vrot.lane.b32.xlu0 %v242, 16
      %v382 = vpop.permute.xlu0 %381
      %383 = vrot.lane.b32.xlu0 %v244, 16
      %v384 = vpop.permute.xlu0 %383
      %385 = vrot.lane.b32.xlu0 %v246, 16
      %v386 = vpop.permute.xlu0 %385
      %387 = vrot.lane.b32.xlu0 %v248, 16
      %v388 = vpop.permute.xlu0 %387
      %389 = vrot.lane.b32.xlu0 %v250, 16
      %v390 = vpop.permute.xlu0 %389
      %399 = vrot.lane.b32.xlu0 %v270, 24
      %v400 = vpop.permute.xlu0 %399
      %401 = vrot.lane.b32.xlu0 %v273, 24
      %v402 = vpop.permute.xlu0 %401
      %403 = vrot.lane.b32.xlu0 %v276, 24
      %v404 = vpop.permute.xlu0 %403
      %405 = vrot.lane.b32.xlu0 %v279, 24
      %v406 = vpop.permute.xlu0 %405
      %407 = vrot.lane.b32.xlu0 %v282, 24
      %v408 = vpop.permute.xlu0 %407
      %409 = vrot.lane.b32.xlu0 %v285, 24
      %v410 = vpop.permute.xlu0 %409
      %411 = vrot.lane.b32.xlu0 %v288, 24
      %v412 = vpop.permute.xlu0 %411
      %413 = vrot.lane.b32.xlu0 %v291, 24
      %v414 = vpop.permute.xlu0 %413
      %423 = vrot.lane.b32.xlu0 %v295, 32
      %v424 = vpop.permute.xlu0 %423
      %425 = vrot.lane.b32.xlu0 %v297, 32
      %v426 = vpop.permute.xlu0 %425
      %427 = vrot.lane.b32.xlu0 %v299, 32
      %v428 = vpop.permute.xlu0 %427
      %429 = vrot.lane.b32.xlu0 %v301, 32
      %v430 = vpop.permute.xlu0 %429
      %431 = vrot.lane.b32.xlu0 %v303, 32
      %v432 = vpop.permute.xlu0 %431
      %433 = vrot.lane.b32.xlu0 %v305, 32
      %v434 = vpop.permute.xlu0 %433
      %435 = vrot.lane.b32.xlu0 %v307, 32
      %v436 = vpop.permute.xlu0 %435
      %437 = vrot.lane.b32.xlu0 %v309, 32
      %v438 = vpop.permute.xlu0 %437
      %447 = vrot.lane.b32.xlu0 %v329, 40
      %v448 = vpop.permute.xlu0 %447
      %449 = vrot.lane.b32.xlu0 %v332, 40
      %v450 = vpop.permute.xlu0 %449
      %451 = vrot.lane.b32.xlu0 %v335, 40
      %v452 = vpop.permute.xlu0 %451
      %453 = vrot.lane.b32.xlu0 %v338, 40
      %v454 = vpop.permute.xlu0 %453
      %455 = vrot.lane.b32.xlu0 %v341, 40
      %v456 = vpop.permute.xlu0 %455
      %457 = vrot.lane.b32.xlu0 %v344, 40
      %v458 = vpop.permute.xlu0 %457
      %459 = vrot.lane.b32.xlu0 %v347, 40
      %v460 = vpop.permute.xlu0 %459
      %461 = vrot.lane.b32.xlu0 %v350, 40
      %v462 = vpop.permute.xlu0 %461
      %vm471 = vcmask 64512
      %v472 = vsel %vm471, %v177, %v352
      %v473 = vsel %vm471, %v179, %v354
      %v474 = vsel %vm471, %v181, %v356
      %v475 = vsel %vm471, %v183, %v358
      %v476 = vsel %vm471, %v185, %v360
      %v477 = vsel %vm471, %v187, %v362
      %v478 = vsel %vm471, %v189, %v364
      %v479 = vsel %vm471, %v191, %v366
      %vm480 = vcmask 130048
      %v481 = vsel %vm480, %v472, %v376
      %v482 = vsel %vm480, %v473, %v378
      %v483 = vsel %vm480, %v474, %v380
      %v484 = vsel %vm480, %v475, %v382
      %v485 = vsel %vm480, %v476, %v384
      %v486 = vsel %vm480, %v477, %v386
      %v487 = vsel %vm480, %v478, %v388
      %v488 = vsel %vm480, %v479, %v390
      %vm489 = vcmask 195584
      %v490 = vsel %vm489, %v481, %v400
      %v491 = vsel %vm489, %v482, %v402
      %v492 = vsel %vm489, %v483, %v404
      %v493 = vsel %vm489, %v484, %v406
      %v494 = vsel %vm489, %v485, %v408
      %v495 = vsel %vm489, %v486, %v410
      %v496 = vsel %vm489, %v487, %v412
      %v497 = vsel %vm489, %v488, %v414
      %vm498 = vcmask 261120
      %v499 = vsel %vm498, %v490, %v424
      %v500 = vsel %vm498, %v491, %v426
      %v501 = vsel %vm498, %v492, %v428
      %v502 = vsel %vm498, %v493, %v430
      %v503 = vsel %vm498, %v494, %v432
      %v504 = vsel %vm498, %v495, %v434
      %v505 = vsel %vm498, %v496, %v436
      %v506 = vsel %vm498, %v497, %v438
      %vm507 = vcmask 326656
      %v508 = vsel %vm507, %v499, %v448
      %v509 = vsel %vm507, %v500, %v450
      %v510 = vsel %vm507, %v501, %v452
      %v511 = vsel %vm507, %v502, %v454
      %v512 = vsel %vm507, %v503, %v456
      %v513 = vsel %vm507, %v504, %v458
      %v514 = vsel %vm507, %v505, %v460
      %v515 = vsel %vm507, %v506, %v462
      %v516 = vld [vmem:[%s1] sm:$0xff]
      %v517 = vld [vmem:[%s1 + $0x8] sm:$0xff]
      %v518 = vld [vmem:[%s1 + $0x10] sm:$0xff]
      %v519 = vld [vmem:[%s1 + $0x18] sm:$0xff]
      %v520 = vld [vmem:[%s1 + $0x20] sm:$0xff]
      %v521 = vld [vmem:[%s1 + $0x28] sm:$0xff]
      %vm522 = vcmask 392192
      %v524 = vsel %vm522, %v508, 0
      %v527 = vsel %vm522, %v509, 0
      %v530 = vsel %vm522, %v510, 0
      %v533 = vsel %vm522, %v511, 0
      %v536 = vsel %vm522, %v512, 0
      %v539 = vsel %vm522, %v513, 0
      %v542 = vsel %vm522, %v514, 0
      %v545 = vsel %vm522, %v515, 0
      %547 = vmatprep.subr.mxu0 0.0
      %548 = vmatpush1.msra.mxu0 %v516
      %549 = vmatprep.subr.mxu0 0.0
      %550 = vmatpush1.msra.mxu0 %v517
      %551 = vmatprep.subr.mxu0 0.0
      %552 = vmatpush1.msra.mxu0 %v518
      %553 = vmatprep.subr.mxu0 0.0
      %554 = vmatpush1.msra.mxu0 %v519
      %555 = vmatprep.subr.mxu0 0.0
      %556 = vmatpush1.msra.mxu0 %v520
      %557 = vmatprep.subr.mxu0 0.0
      %558 = vmatpush1.msra.mxu0 %v521
      %559 = vmatprep.subr.mxu0 0.0
      %560 = vmatpush1.msra.mxu0 0.0
      %561 = vmatprep.subr.mxu0 0.0
      %562 = vmatpush1.msra.mxu0 0.0
      %563 = vmatprep.subr.mxu0 0.0
      %564 = vmatpush1.msra.mxu0 0.0
      %565 = vmatprep.subr.mxu0 0.0
      %566 = vmatpush1.msra.mxu0 0.0
      %567 = vmatprep.subr.mxu0 0.0
      %568 = vmatpush1.msra.mxu0 0.0
      %569 = vmatprep.subr.mxu0 0.0
      %570 = vmatpush1.msra.mxu0 0.0
      %571 = vmatprep.subr.mxu0 0.0
      %572 = vmatpush1.msra.mxu0 0.0
      %573 = vmatprep.subr.mxu0 0.0
      %574 = vmatpush1.msra.mxu0 0.0
      %575 = vmatprep.subr.mxu0 0.0
      %576 = vmatpush1.msra.mxu0 0.0
      %577 = vmatprep.subr.mxu0 0.0
      %578 = vmatpush1.msra.mxu0 0.0
      %579 = vmatprep.subr.mxu0 0.0
      %580 = vmatpush1.msra.mxu0 0.0
      %581 = vmatprep.subr.mxu0 0.0
      %582 = vmatpush1.msra.mxu0 0.0
      %583 = vmatprep.subr.mxu0 0.0
      %584 = vmatpush1.msra.mxu0 0.0
      %585 = vmatprep.subr.mxu0 0.0
      %586 = vmatpush1.msra.mxu0 0.0
      %587 = vmatprep.subr.mxu0 0.0
      %588 = vmatpush1.msra.mxu0 0.0
      %589 = vmatprep.subr.mxu0 0.0
      %590 = vmatpush1.msra.mxu0 0.0
      %591 = vmatprep.subr.mxu0 0.0
      %592 = vmatpush1.msra.mxu0 0.0
      %593 = vmatprep.subr.mxu0 0.0
      %594 = vmatpush1.msra.mxu0 0.0
      %595 = vmatprep.subr.mxu0 0.0
      %596 = vmatpush1.msra.mxu0 0.0
      %597 = vmatprep.subr.mxu0 0.0
      %598 = vmatpush1.msra.mxu0 0.0
      %599 = vmatprep.subr.mxu0 0.0
      %600 = vmatpush1.msra.mxu0 0.0
      %601 = vmatprep.subr.mxu0 0.0
      %602 = vmatpush1.msra.mxu0 0.0
      %603 = vmatprep.subr.mxu0 0.0
      %604 = vmatpush1.msra.mxu0 0.0
      %605 = vmatprep.subr.mxu0 0.0
      %606 = vmatpush1.msra.mxu0 0.0
      %607 = vmatprep.subr.mxu0 0.0
      %608 = vmatpush1.msra.mxu0 0.0
      %609 = vmatprep.subr.mxu0 0.0
      %610 = vmatpush1.msra.mxu0 0.0
      %611 = vmatprep.mubr.f32.mxu0 0.0
      %612 = vmatmul.mubr.f32.gmra.mrb[0].mxu0 %v524
      %v613 = vpop.f32.mrb[0].mxu0
      %v614 = vadd.f32 0.0, %v613
      %v615 = vpop.f32.mrb[0].mxu0
      %616 = vmatprep.mubr.f32.mxu0 0.0
      %617 = vmatmul.mubr.f32.gmra.mrb[0].mxu0 %v527
      %v618 = vpop.f32.mrb[0].mxu0
      %v619 = vadd.f32 0.0, %v618
      %v620 = vpop.f32.mrb[0].mxu0
      %621 = vmatprep.mubr.f32.mxu0 0.0
      %622 = vmatmul.mubr.f32.gmra.mrb[0].mxu0 %v530
      %v623 = vpop.f32.mrb[0].mxu0
      %v624 = vadd.f32 0.0, %v623
      %v625 = vpop.f32.mrb[0].mxu0
      %626 = vmatprep.mubr.f32.mxu0 0.0
      %627 = vmatmul.mubr.f32.gmra.mrb[0].mxu0 %v533
      %v628 = vpop.f32.mrb[0].mxu0
      %v629 = vadd.f32 0.0, %v628
      %v630 = vpop.f32.mrb[0].mxu0
      %631 = vmatprep.mubr.f32.mxu0 0.0
      %632 = vmatmul.mubr.f32.gmra.mrb[0].mxu0 %v536
      %v633 = vpop.f32.mrb[0].mxu0
      %v634 = vadd.f32 0.0, %v633
      %v635 = vpop.f32.mrb[0].mxu0
      %636 = vmatprep.mubr.f32.mxu0 0.0
      %637 = vmatmul.mubr.f32.gmra.mrb[0].mxu0 %v539
      %v638 = vpop.f32.mrb[0].mxu0
      %v639 = vadd.f32 0.0, %v638
      %v640 = vpop.f32.mrb[0].mxu0
      %641 = vmatprep.mubr.f32.mxu0 0.0
      %642 = vmatmul.mubr.f32.gmra.mrb[0].mxu0 %v542
      %v643 = vpop.f32.mrb[0].mxu0
      %v644 = vadd.f32 0.0, %v643
      %v645 = vpop.f32.mrb[0].mxu0
      %646 = vmatprep.mubr.f32.mxu0 0.0
      %647 = vmatmul.mubr.f32.gmra.mrb[0].mxu0 %v545
      %v648 = vpop.f32.mrb[0].mxu0
      %v649 = vadd.f32 0.0, %v648
      %v650 = vpop.f32.mrb[0].mxu0
      %651 = vdwg.mxu0
      %v652 = vadd.f32 %v614, %v619
      %v653 = vadd.f32 %v652, %v624
      %v654 = vadd.f32 %v653, %v629
      %v655 = vadd.f32 %v654, %v634
      %v656 = vadd.f32 %v655, %v639
      %v657 = vadd.f32 %v656, %v644
      %v658 = vadd.f32 %v657, %v649
      %v659 = vrot.slane %v658, 4
      %v660 = vadd.f32 %v658, %v659
      %v661 = vrot.slane %v660, 2
      %v662 = vadd.f32 %v660, %v661
      %v663 = vrot.slane %v662, 1
      %v664 = vadd.f32 %v662, %v663
      %v665 = vmul.f32 %v614, %v614
      %v666 = vmul.f32 %v619, %v619
      %v667 = vmul.f32 %v624, %v624
      %v668 = vmul.f32 %v629, %v629
      %v669 = vmul.f32 %v634, %v634
      %v670 = vmul.f32 %v639, %v639
      %v671 = vmul.f32 %v644, %v644
      %v672 = vmul.f32 %v649, %v649
      %v673 = vadd.f32 %v665, %v666
      %v674 = vadd.f32 %v673, %v667
      %v675 = vadd.f32 %v674, %v668
      %v676 = vadd.f32 %v675, %v669
      %v677 = vadd.f32 %v676, %v670
      %v678 = vadd.f32 %v677, %v671
      %v679 = vadd.f32 %v678, %v672
      %v680 = vrot.slane %v679, 4
      %v681 = vadd.f32 %v679, %v680
      %v682 = vrot.slane %v681, 2
      %v683 = vadd.f32 %v681, %v682
      %v684 = vrot.slane %v683, 1
      %v685 = vadd.f32 %v683, %v684
      %v686 = vmul.f32 %v664, 0.015625
      %v687 = vmul.f32 %v685, 0.015625
      %v688 = vmul.f32 %v686, %v686
      %v689 = vsub.f32 %v687, %v688
      %v690 = vmax.f32 %v689, 0.0
      %v691 = vsub.f32 %v614, %v686
      %v692 = vsub.f32 %v619, %v686
      %v693 = vsub.f32 %v624, %v686
      %v694 = vsub.f32 %v629, %v686
      %v695 = vsub.f32 %v634, %v686
      %v696 = vsub.f32 %v639, %v686
      %v697 = vsub.f32 %v644, %v686
      %v698 = vsub.f32 %v649, %v686
      %v699 = vadd.f32 %v690, 1e-05
      %v700 = vrsqrt.pop %v699
      %v701 = vmul.f32 %v691, %v700
      %v702 = vmul.f32 %v692, %v700
      %v703 = vmul.f32 %v693, %v700
      %v704 = vmul.f32 %v694, %v700
      %v705 = vmul.f32 %v695, %v700
      %v706 = vmul.f32 %v696, %v700
      %v707 = vmul.f32 %v697, %v700
      %v708 = vmul.f32 %v698, %v700
      %v709 = vmax.f32 %v701, 0.0
      %v710 = vmax.f32 %v702, 0.0
      %v711 = vmax.f32 %v703, 0.0
      %v712 = vmax.f32 %v704, 0.0
      %v713 = vmax.f32 %v705, 0.0
      %v714 = vmax.f32 %v706, 0.0
      %v715 = vmax.f32 %v707, 0.0
      %v716 = vmax.f32 %v708, 0.0
      %717 = vxpose.xlu0.b32.start [1/16] %v709, 128
      %718 = vxpose.xlu0.b32.cont [2/16] %v710, 128
      %719 = vxpose.xlu0.b32.cont [3/16] %v711, 128
      %720 = vxpose.xlu0.b32.cont [4/16] %v712, 128
      %721 = vxpose.xlu0.b32.cont [5/16] %v713, 128
      %722 = vxpose.xlu0.b32.cont [6/16] %v714, 128
      %723 = vxpose.xlu0.b32.cont [7/16] %v715, 128
      %724 = vxpose.xlu0.b32.cont [8/16] %v716, 128
      %725 = vxpose.xlu0.b32.cont [9/16] 0.0, 128
      %726 = vxpose.xlu0.b32.cont [10/16] 0.0, 128
      %727 = vxpose.xlu0.b32.cont [11/16] 0.0, 128
      %728 = vxpose.xlu0.b32.cont [12/16] 0.0, 128
      %729 = vxpose.xlu0.b32.cont [13/16] 0.0, 128
      %730 = vxpose.xlu0.b32.cont [14/16] 0.0, 128
      %731 = vxpose.xlu0.b32.cont [15/16] 0.0, 128
      %732 = vxpose.xlu0.b32.end [16/16] 0.0, 128
      %v733 = vpop.trf.xlu0
      %v734 = vpop.trf.xlu0
      %v735 = vpop.trf.xlu0
      %v736 = vpop.trf.xlu0
      %v737 = vpop.trf.xlu0
      %v738 = vpop.trf.xlu0
      %v739 = vpop.trf.xlu0
      %v740 = vpop.trf.xlu0
      %v741 = vpop.trf.xlu0
      %v742 = vpop.trf.xlu0
      %v743 = vpop.trf.xlu0
      %v744 = vpop.trf.xlu0
      %v745 = vpop.trf.xlu0
      %v746 = vpop.trf.xlu0
      %v747 = vpop.trf.xlu0
      %v748 = vpop.trf.xlu0
      %vm749 = vcmask 523264
      %750 = vst.msk [vmem:[%s172] sm:$0xff] %vm749, %v733
      %s751 = smul.u32 %s20, %s19
      %p752 = scmp.lt.s32.totalorder %s18, 1
      %s753 = scalar_select %p752, %s18, 1
      %p754 = scmp.lt.s32.totalorder %s751, 0
      %s755 = scalar_select %p754, %s751, 0
      %s756 = sadd.s32 %s755, %s753
      %s757 = smul.addr %s756, 8
      %s758 = scalar_lea.vmem %s2, %s757
      // Predicated region
      $region29: #{conv_in_relu.1} parent=27 // pred_check
        %p759 = pneg %p101
      $region30: #{conv_in_relu.1} parent=27 // pred_check_branch
        %761 = sbr.rel (%p759) target = $region32
      $region31: #{conv_in_relu.1} parent=27 // pred_region
        %s762 = smul.u32 %s20, %s19
      $region32: #{conv_in_relu.1} parent=27 // pred_fallthru
        _
    $region28: #{conv_in_relu.1} parent=5 // pred_fallthru
      _
    %p763 = scmp.le.s32.totalorder 2, %s8
    // Predicated region
    $region33: #{conv_in_relu.1} parent=5 // pred_check
      %p764 = pneg %p763
    $region34: #{conv_in_relu.1} parent=5 // pred_check_branch
      %766 = sbr.rel (%p764) target = $region36
    $region35: #{conv_in_relu.1} parent=5 // pred_region
      %s767 = ssub.s32 %s8, 2
      // Predicated region
      $region37: #{conv_in_relu.1} parent=35 // pred_check
        %p768 = pneg %p107
      $region38: #{conv_in_relu.1} parent=35 // pred_check_branch
        %770 = sbr.rel (%p768) target = $region40
      $region39: #{conv_in_relu.1} parent=35 // pred_region
        %s771 = smul.u32 %s23, %s22
        %p772 = scmp.lt.s32.totalorder %s21, 1
        %s773 = scalar_select %p772, %s21, 1
        %p774 = scmp.lt.s32.totalorder %s771, 0
        %s775 = scalar_select %p774, %s771, 0
        %s776 = sadd.s32 %s775, %s773
        %s777 = smul.addr %s776, 8
        %s778 = scalar_lea.vmem %s2, %s777
      $region40: #{conv_in_relu.1} parent=35 // pred_fallthru
        _
    $region36: #{conv_in_relu.1} parent=5 // pred_fallthru
      _
  $region6: #{conv_in_relu.1} parent=0 // loop_footer
    %s12 = sadd.s32 1, %s8
  $region7: #{conv_in_relu.1} parent=0 // loop_footer_branch
    %7 = sbr.rel target = $region3
  $region8: #{conv_in_relu.1} parent=0 // loop_exit
    _

</llo_original>
